<compile_context>
chip_gen: v7x
topology: tpu7x:2x2x1
jax: 0.10.0
libtpu: 0.0.40
codegen_flags: <defaults>
</compile_context>

<pallas_src>
import functools

import jax
import jax.numpy as jnp
from jax.experimental import pallas as pl
from jax.experimental.pallas import tpu as pltpu

BN_EPS = 1e-5
_VMEM_LIMIT = 48 * 1024 * 1024          # cap usable on v5e/v6e (128 MiB) and v7x (64 MiB)
_TILE_BUDGET_ELEMS = 2 * 1024 * 1024    # ~8 MiB of f32 per grid-step input block
_MAX_LANE_TILE = 32768                  # review: raise the l_tile cap well past 2048
_MAX_BATCH_BLOCK = 8


def _pick_lane_tile(dim, max_tile):
    """Largest lane-friendly tile: full dim if it fits, else a 128-multiple divisor."""
    if dim <= max_tile:
        return dim
    top = (max_tile // 128) * 128
    for cand in range(top, 0, -128):
        if dim % cand == 0:
            return cand
    # No lane-aligned divisor <= max_tile: fall back to the full dim (layout-legal).
    return dim


def _pick_batch_block(n, per_batch_elems, budget=_TILE_BUDGET_ELEMS, cap=_MAX_BATCH_BLOCK):
    """Largest divisor of n (<= cap) whose block still fits the VMEM element budget."""
    best = 1
    for d in range(1, min(n, cap) + 1):
        if n % d == 0 and d * per_batch_elems <= budget:
            best = d
    return best


def _conv(x_tile, w_ref, use_mxu, c_in):
    """k=1 conv, no bias: x_tile (C_in, L) -> (C_out, L) f32."""
    if use_mxu:
        # w_ref: (C_out, C_in)
        return jnp.dot(w_ref[...], x_tile, preferred_element_type=jnp.float32)
    # VPU path for tiny channel counts (MXU would be <5% utilized): unrolled
    # broadcast multiply-adds, accumulator initialised from the c=0 term.
    z = w_ref[0] * x_tile[0:1, :]                      # (C_out,1)*(1,L) -> (C_out,L)
    for c in range(1, c_in):
        z = z + w_ref[c] * x_tile[c:c + 1, :]
    return z


def _stats_kernel(x_ref, w_ref, b_ref, sum_ref, sq_ref, *, b_blk, c_in, use_mxu):
    """Pass 1: per-(batch-block, L-tile) partial sum / sum-of-squares of relu(conv(x)).

    x_ref: (B_blk, C_in, l1) contiguous tile; sum_ref/sq_ref: (1, 1, C_out, 1) partials.
    """
    bvec = b_ref[...]                                  # (C_out, 1)
    s_tot = None
    q_tot = None
    for b in range(b_blk):
        y = jnp.maximum(_conv(x_ref[b], w_ref, use_mxu, c_in) + bvec, 0.0)   # (C_out,l1)
        s_b = jnp.sum(y, axis=1, keepdims=True)
        q_b = jnp.sum(y * y, axis=1, keepdims=True)
        s_tot = s_b if s_tot is None else s_tot + s_b
        q_tot = q_b if q_tot is None else q_tot + q_b
    sum_ref[0, 0] = s_tot
    sq_ref[0, 0] = q_tot


def _pool_kernel(xs_ref, w_ref, p_ref, o_ref, *, b_blk, c_in, pool_k, use_mxu):
    """Pass 2: recompute conv, pool via max/min of the pre-bias conv output, then apply
    relu + folded BN affine once per pooled position.

    xs_ref: (pool_k, B_blk, C_in, l2); p_ref: (3, C_out, 1) = [bias, scale, shift];
    o_ref: (B_blk, C_out, l2) lane-dense output block.
    """
    bvec = p_ref[0]                                    # (C_out, 1)
    scale = p_ref[1]                                   # gamma * rsqrt(var + eps)
    shift = p_ref[2]                                   # beta - mean * scale
    for b in range(b_blk):
        zmax = None
        zmin = None
        for j in range(pool_k):
            z = _conv(xs_ref[j, b], w_ref, use_mxu, c_in)          # (C_out, l2)
            zmax = z if zmax is None else jnp.maximum(zmax, z)
            zmin = z if zmin is None else jnp.minimum(zmin, z)
        # max_j(scale*relu(z_j+b)+shift): relu is monotone, so it is
        # scale*relu(zmax+b) for scale>=0 and scale*relu(zmin+b) for scale<0.
        hi = scale * jnp.maximum(zmax + bvec, 0.0)
        lo = scale * jnp.maximum(zmin + bvec, 0.0)
        o_ref[b] = (jnp.maximum(hi, lo) + shift).astype(o_ref.dtype)


def building_block_forward(x, conv_w, conv_b, gamma, beta, *, pool_k=3,
                           l_tile_stats=None, l_tile_pool=None, batch_block=None):
    """x: (N, C_in, L) f32; conv_w: (C_out, C_in, 1); conv_b/gamma/beta: (C_out,).

    Returns (N, C_out, L // pool_k).  Matches PyTorch training-mode semantics:
    BN stats cover the full length L, MaxPool1d drops the tail positions.
    """
    N, C_in, L = x.shape
    C_out = conv_w.shape[0]
    Lp = L // pool_k
    assert Lp > 0, "L must be at least pool_k"

    # TODO(synk): make the MXU threshold generation-aware (use MXU at lower channel
    # counts on v7x where the VALU is the bottleneck); bf16 MXU inputs skipped to
    # keep f32 accuracy within 1e-4 of the reference.
    use_mxu = (C_in >= 16) and (C_out >= 16)
    if use_mxu:
        w_arg = conv_w[:, :, 0]                                        # (C_out, C_in)
        w_spec = pl.BlockSpec((C_out, C_in), lambda nb, t: (0, 0))
    else:
        w_arg = jnp.transpose(conv_w[:, :, 0]).reshape(C_in, C_out, 1)  # (C_in, C_out, 1)
        w_spec = pl.BlockSpec((C_in, C_out, 1), lambda nb, t: (0, 0, 0))
    b_col = conv_b.reshape(C_out, 1)

    # ---------------- pass 1: partial BN statistics over the FULL length L ----------------
    if l_tile_stats is None:
        l1 = _pick_lane_tile(L, min(_MAX_LANE_TILE,
                                    max(128, _TILE_BUDGET_ELEMS // max(C_in, 1))))
    else:
        l1 = l_tile_stats
    assert L % l1 == 0, "l_tile_stats must divide L"
    bb1 = batch_block if batch_block is not None else _pick_batch_block(N, C_in * l1)
    assert N % bb1 == 0, "batch_block must divide N"
    NB1, T1 = N // bb1, L // l1

    stats_kernel = functools.partial(_stats_kernel, b_blk=bb1, c_in=C_in, use_mxu=use_mxu)
    psum, psq = pl.pallas_call(
        stats_kernel,
        grid=(NB1, T1),
        in_specs=[pl.BlockSpec((bb1, C_in, l1), lambda nb, t: (nb, 0, t)),
                  w_spec,
                  pl.BlockSpec((C_out, 1), lambda nb, t: (0, 0))],
        out_specs=(pl.BlockSpec((1, 1, C_out, 1), lambda nb, t: (nb, t, 0, 0)),
                   pl.BlockSpec((1, 1, C_out, 1), lambda nb, t: (nb, t, 0, 0))),
        out_shape=(jax.ShapeDtypeStruct((NB1, T1, C_out, 1), jnp.float32),
                   jax.ShapeDtypeStruct((NB1, T1, C_out, 1), jnp.float32)),
        compiler_params=pltpu.CompilerParams(
            dimension_semantics=("parallel", "parallel"),
            vmem_limit_bytes=_VMEM_LIMIT),
    )(x, w_arg, b_col)

    # Chan group-combine of the per-tile partials (tiny (C_out,)-sized wrapper math);
    # avoids the global one-pass E[y^2]-E[y]^2 cancellation.
    s = psum[:, :, :, 0]                                   # (NB1, T1, C_out)
    q = psq[:, :, :, 0]
    n_p = jnp.float32(bb1 * l1)
    total = jnp.float32(N * L)
    mean_p = s / n_p
    m2_p = jnp.maximum(q - n_p * mean_p * mean_p, 0.0)
    mean = jnp.sum(s, axis=(0, 1)) / total                 # (C_out,)
    m2 = jnp.sum(m2_p, axis=(0, 1)) + jnp.sum(n_p * jnp.square(mean_p - mean), axis=(0, 1))
    var = m2 / total                                       # biased variance (torch BN)
    inv = jax.lax.rsqrt(var + BN_EPS)
    scale = gamma * inv
    shift = beta - mean * scale
    params2 = jnp.stack([conv_b, scale, shift], axis=0).reshape(3, C_out, 1)

    # ---------------- pass 2: recompute conv, normalize + max-pool ----------------
    if l_tile_pool is None:
        l2 = _pick_lane_tile(Lp, min(_MAX_LANE_TILE,
                                     max(128, _TILE_BUDGET_ELEMS
                                         // max(pool_k * C_in + C_out, 1))))
    else:
        l2 = l_tile_pool
    assert Lp % l2 == 0, "l_tile_pool must divide Lp"
    bb2 = (batch_block if batch_block is not None
           else _pick_batch_block(N, (pool_k * C_in + C_out) * l2))
    assert N % bb2 == 0, "batch_block must divide N"
    NB2, T2 = N // bb2, Lp // l2

    # Single XLA deinterleave feeding pass 2 only: (N,C_in,L) -> (pool_k,N,C_in,Lp);
    # channels stay in sublanes, pooled positions in lanes (lane-dense output blocks).
    xs = jnp.transpose(x[:, :, :Lp * pool_k].reshape(N, C_in, Lp, pool_k), (3, 0, 1, 2))

    pool_kernel = functools.partial(_pool_kernel, b_blk=bb2, c_in=C_in,
                                    pool_k=pool_k, use_mxu=use_mxu)
    out = pl.pallas_call(
        pool_kernel,
        grid=(NB2, T2),
        in_specs=[pl.BlockSpec((pool_k, bb2, C_in, l2), lambda nb, t: (0, nb, 0, t)),
                  w_spec,
                  pl.BlockSpec((3, C_out, 1), lambda nb, t: (0, 0, 0))],
        out_specs=pl.BlockSpec((bb2, C_out, l2), lambda nb, t: (nb, 0, t)),
        out_shape=jax.ShapeDtypeStruct((N, C_out, Lp), jnp.float32),
        compiler_params=pltpu.CompilerParams(
            dimension_semantics=("parallel", "parallel"),
            vmem_limit_bytes=_VMEM_LIMIT),
    )(xs, w_arg, params2)
    return out


def reference_forward(x, conv_w, conv_b, gamma, beta, *, pool_k=3):
    """Pure-JAX reference mirroring the PyTorch module (training-mode BN)."""
    y = jnp.einsum("ncl,oc->nol", x, conv_w[:, :, 0]) + conv_b[None, :, None]
    y = jnp.maximum(y, 0.0)
    mean = y.mean(axis=(0, 2))
    var = ((y - mean[None, :, None]) ** 2).mean(axis=(0, 2))
    yn = (y - mean[None, :, None]) * jax.lax.rsqrt(var + BN_EPS)[None, :, None]
    yn = yn * gamma[None, :, None] + beta[None, :, None]
    N, C_out, L = yn.shape
    Lp = L // pool_k
    return yn[..., :Lp * pool_k].reshape(N, C_out, Lp, pool_k).max(axis=-1)


if __name__ == "__main__":
    def make_inputs(key, N, C_in, C_out, L):
        kx, kw, kb, kg, kbe = jax.random.split(key, 5)
        x = jax.random.normal(kx, (N, C_in, L), dtype=jnp.float32)
        conv_w = jax.random.normal(kw, (C_out, C_in, 1), dtype=jnp.float32) * 0.5
        conv_b = jax.random.normal(kb, (C_out,), dtype=jnp.float32) * 0.1
        gamma = 1.0 + 0.1 * jax.random.normal(kg, (C_out,), dtype=jnp.float32)
        beta = 0.1 * jax.random.normal(kbe, (C_out,), dtype=jnp.float32)
        return x, conv_w, conv_b, gamma, beta

    pool_k = 3
    k1, k2, k3 = jax.random.split(jax.random.PRNGKey(0), 3)

    # Case 1: small shapes consistent with the module (N=2, C_in=4, C_out=8, L=48).
    args = make_inputs(k1, 2, 4, 8, 48)
    out = jax.block_until_ready(building_block_forward(*args, pool_k=pool_k))
    ref = reference_forward(*args, pool_k=pool_k)
    assert out.shape == (2, 8, 16), out.shape
    assert jnp.allclose(out, ref, atol=1e-4, rtol=1e-4), "case 1 mismatch vs reference"

    # Case 2: multi-tile grids (forced small tiles and per-batch blocking) to exercise
    # the tiled partial-stats path and the parallel normalize/pool pass.
    args2 = make_inputs(k2, 2, 4, 8, 3 * 256)
    out2 = jax.block_until_ready(building_block_forward(
        *args2, pool_k=pool_k, l_tile_stats=384, l_tile_pool=128, batch_block=1))
    ref2 = reference_forward(*args2, pool_k=pool_k)
    assert out2.shape == (2, 8, 256), out2.shape
    assert jnp.allclose(out2, ref2, atol=1e-4, rtol=1e-4), "case 2 mismatch vs reference"

    # Case 3: L not a multiple of pool_k (tail kept in BN stats, dropped by the pool,
    # matching PyTorch) and an odd batch size exercising the batch-block picker.
    args3 = make_inputs(k3, 3, 4, 8, 50)
    out3 = jax.block_until_ready(building_block_forward(*args3, pool_k=pool_k))
    ref3 = reference_forward(*args3, pool_k=pool_k)
    assert out3.shape == (3, 8, 16), out3.shape
    assert jnp.allclose(out3, ref3, atol=1e-4, rtol=1e-4), "case 3 mismatch vs reference"

    print("KERNEL_OK")
</pallas_src>

<mosaic_0001>
module attributes {stable_mosaic.version = 11 : i64} {
  func.func @_stats_kernel(%arg0: i32, %arg1: i32, %arg2: memref<2x4x48xf32, #tpu.memory_space<vmem>>, %arg3: memref<4x8x1xf32, #tpu.memory_space<vmem>>, %arg4: memref<8x1xf32, #tpu.memory_space<vmem>>, %arg5: memref<1x1x8x1xf32, #tpu.memory_space<vmem>>, %arg6: memref<1x1x8x1xf32, #tpu.memory_space<vmem>>) attributes {dimension_semantics = [#tpu.dimension_semantics<parallel>, #tpu.dimension_semantics<parallel>], iteration_bounds = array<i64: 1, 1>, scalar_prefetch = 0 : i64, scratch_operands = 0 : i64, tpu.core_type = #tpu.core_type<tc>, window_params = [{transform_indices = @transform_0, window_bounds = array<i64: 2, 4, 48>}, {pipeline_mode = #tpu.pipeline_mode<synchronous>, transform_indices = @transform_1, window_bounds = array<i64: 4, 8, 1>}, {pipeline_mode = #tpu.pipeline_mode<synchronous>, transform_indices = @transform_2, window_bounds = array<i64: 8, 1>}, {transform_indices = @transform_3, window_bounds = array<i64: 1, 1, 8, 1>}, {transform_indices = @transform_4, window_bounds = array<i64: 1, 1, 8, 1>}]} {
    %c0 = arith.constant 0 : index
    %c0_0 = arith.constant 0 : index
    %0 = vector.load %arg4[%c0, %c0_0] : memref<8x1xf32, #tpu.memory_space<vmem>>, vector<8x1xf32>
    %c0_1 = arith.constant 0 : index
    %c0_2 = arith.constant 0 : index
    %c0_3 = arith.constant 0 : index
    %1 = vector.load %arg2[%c0_1, %c0_2, %c0_3] : memref<2x4x48xf32, #tpu.memory_space<vmem>>, vector<1x4x48xf32>
    %2 = vector.shape_cast %1 : vector<1x4x48xf32> to vector<4x48xf32>
    %c0_4 = arith.constant 0 : index
    %c0_5 = arith.constant 0 : index
    %c0_6 = arith.constant 0 : index
    %3 = vector.load %arg3[%c0_4, %c0_5, %c0_6] : memref<4x8x1xf32, #tpu.memory_space<vmem>>, vector<1x8x1xf32>
    %4 = vector.shape_cast %3 : vector<1x8x1xf32> to vector<8x1xf32>
    %5 = vector.extract_strided_slice %2 {offsets = [0, 0], sizes = [1, 48], strides = [1, 1]} : vector<4x48xf32> to vector<1x48xf32>
    %6 = vector.broadcast %4 : vector<8x1xf32> to vector<8x48xf32>
    %7 = vector.broadcast %5 : vector<1x48xf32> to vector<8x48xf32>
    %8 = arith.mulf %6, %7 : vector<8x48xf32>
    %c1 = arith.constant 1 : index
    %c0_7 = arith.constant 0 : index
    %c0_8 = arith.constant 0 : index
    %9 = vector.load %arg3[%c1, %c0_7, %c0_8] : memref<4x8x1xf32, #tpu.memory_space<vmem>>, vector<1x8x1xf32>
    %10 = vector.shape_cast %9 : vector<1x8x1xf32> to vector<8x1xf32>
    %11 = vector.extract_strided_slice %2 {offsets = [1, 0], sizes = [1, 48], strides = [1, 1]} : vector<4x48xf32> to vector<1x48xf32>
    %12 = vector.broadcast %10 : vector<8x1xf32> to vector<8x48xf32>
    %13 = vector.broadcast %11 : vector<1x48xf32> to vector<8x48xf32>
    %14 = arith.mulf %12, %13 : vector<8x48xf32>
    %15 = arith.addf %8, %14 : vector<8x48xf32>
    %c2 = arith.constant 2 : index
    %c0_9 = arith.constant 0 : index
    %c0_10 = arith.constant 0 : index
    %16 = vector.load %arg3[%c2, %c0_9, %c0_10] : memref<4x8x1xf32, #tpu.memory_space<vmem>>, vector<1x8x1xf32>
    %17 = vector.shape_cast %16 : vector<1x8x1xf32> to vector<8x1xf32>
    %18 = vector.extract_strided_slice %2 {offsets = [2, 0], sizes = [1, 48], strides = [1, 1]} : vector<4x48xf32> to vector<1x48xf32>
    %19 = vector.broadcast %17 : vector<8x1xf32> to vector<8x48xf32>
    %20 = vector.broadcast %18 : vector<1x48xf32> to vector<8x48xf32>
    %21 = arith.mulf %19, %20 : vector<8x48xf32>
    %22 = arith.addf %15, %21 : vector<8x48xf32>
    %c3 = arith.constant 3 : index
    %c0_11 = arith.constant 0 : index
    %c0_12 = arith.constant 0 : index
    %23 = vector.load %arg3[%c3, %c0_11, %c0_12] : memref<4x8x1xf32, #tpu.memory_space<vmem>>, vector<1x8x1xf32>
    %24 = vector.shape_cast %23 : vector<1x8x1xf32> to vector<8x1xf32>
    %25 = vector.extract_strided_slice %2 {offsets = [3, 0], sizes = [1, 48], strides = [1, 1]} : vector<4x48xf32> to vector<1x48xf32>
    %26 = vector.broadcast %24 : vector<8x1xf32> to vector<8x48xf32>
    %27 = vector.broadcast %25 : vector<1x48xf32> to vector<8x48xf32>
    %28 = arith.mulf %26, %27 : vector<8x48xf32>
    %29 = arith.addf %22, %28 : vector<8x48xf32>
    %30 = vector.broadcast %0 : vector<8x1xf32> to vector<8x48xf32>
    %31 = arith.addf %29, %30 : vector<8x48xf32>
    %cst = arith.constant 0.000000e+00 : f32
    %32 = vector.broadcast %cst : f32 to vector<8x48xf32>
    %33 = arith.maximumf %31, %32 : vector<8x48xf32>
    %cst_13 = arith.constant dense<0.000000e+00> : vector<8xf32>
    %34 = vector.multi_reduction <add>, %33, %cst_13 [1] : vector<8x48xf32> to vector<8xf32>
    %35 = vector.shape_cast %34 : vector<8xf32> to vector<8x1xf32>
    %36 = arith.mulf %33, %33 : vector<8x48xf32>
    %cst_14 = arith.constant dense<0.000000e+00> : vector<8xf32>
    %37 = vector.multi_reduction <add>, %36, %cst_14 [1] : vector<8x48xf32> to vector<8xf32>
    %38 = vector.shape_cast %37 : vector<8xf32> to vector<8x1xf32>
    %c1_15 = arith.constant 1 : index
    %c0_16 = arith.constant 0 : index
    %c0_17 = arith.constant 0 : index
    %39 = vector.load %arg2[%c1_15, %c0_16, %c0_17] : memref<2x4x48xf32, #tpu.memory_space<vmem>>, vector<1x4x48xf32>
    %40 = vector.shape_cast %39 : vector<1x4x48xf32> to vector<4x48xf32>
    %c0_18 = arith.constant 0 : index
    %c0_19 = arith.constant 0 : index
    %c0_20 = arith.constant 0 : index
    %41 = vector.load %arg3[%c0_18, %c0_19, %c0_20] : memref<4x8x1xf32, #tpu.memory_space<vmem>>, vector<1x8x1xf32>
    %42 = vector.shape_cast %41 : vector<1x8x1xf32> to vector<8x1xf32>
    %43 = vector.extract_strided_slice %40 {offsets = [0, 0], sizes = [1, 48], strides = [1, 1]} : vector<4x48xf32> to vector<1x48xf32>
    %44 = vector.broadcast %42 : vector<8x1xf32> to vector<8x48xf32>
    %45 = vector.broadcast %43 : vector<1x48xf32> to vector<8x48xf32>
    %46 = arith.mulf %44, %45 : vector<8x48xf32>
    %c1_21 = arith.constant 1 : index
    %c0_22 = arith.constant 0 : index
    %c0_23 = arith.constant 0 : index
    %47 = vector.load %arg3[%c1_21, %c0_22, %c0_23] : memref<4x8x1xf32, #tpu.memory_space<vmem>>, vector<1x8x1xf32>
    %48 = vector.shape_cast %47 : vector<1x8x1xf32> to vector<8x1xf32>
    %49 = vector.extract_strided_slice %40 {offsets = [1, 0], sizes = [1, 48], strides = [1, 1]} : vector<4x48xf32> to vector<1x48xf32>
    %50 = vector.broadcast %48 : vector<8x1xf32> to vector<8x48xf32>
    %51 = vector.broadcast %49 : vector<1x48xf32> to vector<8x48xf32>
    %52 = arith.mulf %50, %51 : vector<8x48xf32>
    %53 = arith.addf %46, %52 : vector<8x48xf32>
    %c2_24 = arith.constant 2 : index
    %c0_25 = arith.constant 0 : index
    %c0_26 = arith.constant 0 : index
    %54 = vector.load %arg3[%c2_24, %c0_25, %c0_26] : memref<4x8x1xf32, #tpu.memory_space<vmem>>, vector<1x8x1xf32>
    %55 = vector.shape_cast %54 : vector<1x8x1xf32> to vector<8x1xf32>
    %56 = vector.extract_strided_slice %40 {offsets = [2, 0], sizes = [1, 48], strides = [1, 1]} : vector<4x48xf32> to vector<1x48xf32>
    %57 = vector.broadcast %55 : vector<8x1xf32> to vector<8x48xf32>
    %58 = vector.broadcast %56 : vector<1x48xf32> to vector<8x48xf32>
    %59 = arith.mulf %57, %58 : vector<8x48xf32>
    %60 = arith.addf %53, %59 : vector<8x48xf32>
    %c3_27 = arith.constant 3 : index
    %c0_28 = arith.constant 0 : index
    %c0_29 = arith.constant 0 : index
    %61 = vector.load %arg3[%c3_27, %c0_28, %c0_29] : memref<4x8x1xf32, #tpu.memory_space<vmem>>, vector<1x8x1xf32>
    %62 = vector.shape_cast %61 : vector<1x8x1xf32> to vector<8x1xf32>
    %63 = vector.extract_strided_slice %40 {offsets = [3, 0], sizes = [1, 48], strides = [1, 1]} : vector<4x48xf32> to vector<1x48xf32>
    %64 = vector.broadcast %62 : vector<8x1xf32> to vector<8x48xf32>
    %65 = vector.broadcast %63 : vector<1x48xf32> to vector<8x48xf32>
    %66 = arith.mulf %64, %65 : vector<8x48xf32>
    %67 = arith.addf %60, %66 : vector<8x48xf32>
    %68 = vector.broadcast %0 : vector<8x1xf32> to vector<8x48xf32>
    %69 = arith.addf %67, %68 : vector<8x48xf32>
    %cst_30 = arith.constant 0.000000e+00 : f32
    %70 = vector.broadcast %cst_30 : f32 to vector<8x48xf32>
    %71 = arith.maximumf %69, %70 : vector<8x48xf32>
    %cst_31 = arith.constant dense<0.000000e+00> : vector<8xf32>
    %72 = vector.multi_reduction <add>, %71, %cst_31 [1] : vector<8x48xf32> to vector<8xf32>
    %73 = vector.shape_cast %72 : vector<8xf32> to vector<8x1xf32>
    %74 = arith.mulf %71, %71 : vector<8x48xf32>
    %cst_32 = arith.constant dense<0.000000e+00> : vector<8xf32>
    %75 = vector.multi_reduction <add>, %74, %cst_32 [1] : vector<8x48xf32> to vector<8xf32>
    %76 = vector.shape_cast %75 : vector<8xf32> to vector<8x1xf32>
    %77 = arith.addf %35, %73 : vector<8x1xf32>
    %78 = arith.addf %38, %76 : vector<8x1xf32>
    %c0_33 = arith.constant 0 : index
    %c0_34 = arith.constant 0 : index
    %c0_35 = arith.constant 0 : index
    %c0_36 = arith.constant 0 : index
    %79 = vector.load %arg5[%c0_33, %c0_34, %c0_35, %c0_36] : memref<1x1x8x1xf32, #tpu.memory_space<vmem>>, vector<1x1x8x1xf32>
    %80 = vector.shape_cast %79 : vector<1x1x8x1xf32> to vector<8x1xf32>
    %81 = vector.shape_cast %77 : vector<8x1xf32> to vector<1x1x8x1xf32>
    tpu.vector_store %arg5[%c0_33, %c0_34, %c0_35, %c0_36], %81 {strides = array<i32>} : memref<1x1x8x1xf32, #tpu.memory_space<vmem>>, vector<1x1x8x1xf32>,
    %c0_37 = arith.constant 0 : index
    %c0_38 = arith.constant 0 : index
    %c0_39 = arith.constant 0 : index
    %c0_40 = arith.constant 0 : index
    %82 = vector.load %arg6[%c0_37, %c0_38, %c0_39, %c0_40] : memref<1x1x8x1xf32, #tpu.memory_space<vmem>>, vector<1x1x8x1xf32>
    %83 = vector.shape_cast %82 : vector<1x1x8x1xf32> to vector<8x1xf32>
    %84 = vector.shape_cast %78 : vector<8x1xf32> to vector<1x1x8x1xf32>
    tpu.vector_store %arg6[%c0_37, %c0_38, %c0_39, %c0_40], %84 {strides = array<i32>} : memref<1x1x8x1xf32, #tpu.memory_space<vmem>>, vector<1x1x8x1xf32>,
    return
  }
  func.func @transform_0(%arg0: i32, %arg1: i32) -> (i32, i32, i32) {
    %c0_i32 = arith.constant 0 : i32
    %c0_i32_0 = arith.constant 0 : i32
    return %arg0, %c0_i32, %arg1 : i32, i32, i32
  }
  func.func @transform_1(%arg0: i32, %arg1: i32) -> (i32, i32, i32) {
    %c0_i32 = arith.constant 0 : i32
    %c0_i32_0 = arith.constant 0 : i32
    %c0_i32_1 = arith.constant 0 : i32
    %c0_i32_2 = arith.constant 0 : i32
    return %c0_i32, %c0_i32_0, %c0_i32_1 : i32, i32, i32
  }
  func.func @transform_2(%arg0: i32, %arg1: i32) -> (i32, i32) {
    %c0_i32 = arith.constant 0 : i32
    %c0_i32_0 = arith.constant 0 : i32
    %c0_i32_1 = arith.constant 0 : i32
    return %c0_i32, %c0_i32_0 : i32, i32
  }
  func.func @transform_3(%arg0: i32, %arg1: i32) -> (i32, i32, i32, i32) {
    %c0_i32 = arith.constant 0 : i32
    %c0_i32_0 = arith.constant 0 : i32
    %c0_i32_1 = arith.constant 0 : i32
    return %arg0, %arg1, %c0_i32, %c0_i32_0 : i32, i32, i32, i32
  }
  func.func @transform_4(%arg0: i32, %arg1: i32) -> (i32, i32, i32, i32) {
    %c0_i32 = arith.constant 0 : i32
    %c0_i32_0 = arith.constant 0 : i32
    %c0_i32_1 = arith.constant 0 : i32
    return %arg0, %arg1, %c0_i32, %c0_i32_0 : i32, i32, i32, i32
  }
}

</mosaic_0001>

<llo_original>
// kernel: tpu_custom_call.1
$region0: #{tpu_custom_call.1}
  #allocation0 [shape = 'u32[]', space=smem, size = 0x4, offset = 0x4, fixed_abs, tag = 'smem constant byte address 0x4 - core index']
  #allocation1 [shape = 'u32[144,128]{1,0:T(1,128)}', space=vmem, size = 0x12000, scoped, tag = 'internal scratch']
  %s0 = inlined_call_operand.vmem [shape: f32[2,4,48], index: 0, kind: input, shape index: {}]
  %s1 = inlined_call_operand.vmem [shape: f32[4,8,1], index: 1, kind: input, shape index: {}]
  %s2 = inlined_call_operand.vmem [shape: f32[8,1], index: 2, kind: input, shape index: {}]
  %s3 = inlined_call_operand.vmem [shape: f32[1,1,8,1], index: 3, kind: output, shape index: {0}]
  %s4 = inlined_call_operand.vmem [shape: f32[1,1,8,1], index: 4, kind: output, shape index: {1}]
  %5 = xla_tuple %s3, %s4
  %s6 = sld [smem:[#allocation0]]
  $region30: #{tpu_custom_call.1} parent=0
    _
  %s8 = ssub.s32 1, %s6
  %s9 = scalar_select 0, %s8, %s6
  // Predicated region
  $region2: #{tpu_custom_call.1} parent=0 // pred_check
    _
  $region3: #{tpu_custom_call.1} parent=0 // pred_check_branch
    %11 = sbr.rel (0) target = $region5
  $region4: #{tpu_custom_call.1} parent=0 // pred_region
    _
  $region5: #{tpu_custom_call.1} parent=0 // pred_fallthru
    _
  // Predicated region
  $region6: #{tpu_custom_call.1} parent=0 // pred_check
    _
  $region7: #{tpu_custom_call.1} parent=0 // pred_check_branch
    %13 = sbr.rel (0) target = $region9
  $region8: #{tpu_custom_call.1} parent=0 // pred_region
    _
  $region9: #{tpu_custom_call.1} parent=0 // pred_fallthru
    _
  // Predicated region
  $region10: #{tpu_custom_call.1} parent=0 // pred_check
    _
  $region11: #{tpu_custom_call.1} parent=0 // pred_check_branch
    %15 = sbr.rel (0) target = $region13
  $region12: #{tpu_custom_call.1} parent=0 // pred_region
    _
  $region13: #{tpu_custom_call.1} parent=0 // pred_fallthru
    _
  %v16 = vld [vmem:[%s2] sm:$0xff]
  %v17 = vld [vmem:[%s0] sm:$0xf]
  %v18 = vld [vmem:[%s1] sm:$0xff]
  %20 = vset.pattern.permute.xlu0 0
  %21 = vperm.xlu0 %20, %v18
  %v22 = vpop.permute.xlu0 %21
  %v24 = vlaneseq
  %v25 = vshrl.u32 %v24, 7
  %v26 = vsub.s32 0, %v25
  %v27 = vrot.slane %v17, %v26
  %v28 = vmul.f32 %v22, %v27
  %s29 = scalar_lea.vmem %s1, 8
  %v30 = vld [vmem:[%s29] sm:$0xff]
  %32 = vset.pattern.permute.xlu0 0
  %33 = vperm.xlu0 %32, %v30
  %v34 = vpop.permute.xlu0 %33
  %v36 = vlaneseq
  %v37 = vshrl.u32 %v36, 7
  %v38 = vsub.s32 1, %v37
  %v39 = vrot.slane %v17, %v38
  %v40 = vmul.f32 %v34, %v39
  %v41 = vadd.f32 %v28, %v40
  %s42 = scalar_lea.vmem %s1, 16
  %v43 = vld [vmem:[%s42] sm:$0xff]
  %45 = vset.pattern.permute.xlu0 0
  %46 = vperm.xlu0 %45, %v43
  %v47 = vpop.permute.xlu0 %46
  %v49 = vlaneseq
  %v50 = vshrl.u32 %v49, 7
  %v51 = vsub.s32 2, %v50
  %v52 = vrot.slane %v17, %v51
  %v53 = vmul.f32 %v47, %v52
  %v54 = vadd.f32 %v41, %v53
  %s55 = scalar_lea.vmem %s1, 24
  %v56 = vld [vmem:[%s55] sm:$0xff]
  %58 = vset.pattern.permute.xlu0 0
  %59 = vperm.xlu0 %58, %v56
  %v60 = vpop.permute.xlu0 %59
  %v62 = vlaneseq
  %v63 = vshrl.u32 %v62, 7
  %v64 = vsub.s32 3, %v63
  %v65 = vrot.slane %v17, %v64
  %v66 = vmul.f32 %v60, %v65
  %v67 = vadd.f32 %v54, %v66
  %69 = vset.pattern.permute.xlu0 0
  %70 = vperm.xlu0 %69, %v16
  %v71 = vpop.permute.xlu0 %70
  %v73 = vadd.f32 %v67, %v71
  %v74 = vmax.f32 %v73, 0.0
  %vm75 = vcmask 392192
  %v76 = vsel %vm75, %v74, 0.0
  %77 = vadd.xlane.f32.xlu0 %v76
  %v78 = vpop.xlane.xlu0 %77
  %v79 = vmul.f32 %v74, %v74
  %v80 = vsel %vm75, %v79, 0.0
  %81 = vadd.xlane.f32.xlu0 %v80
  %v82 = vpop.xlane.xlu0 %81
  %s83 = scalar_lea.vmem %s0, 4
  %v84 = vld [vmem:[%s83] sm:$0xf]
  %v85 = vlaneseq
  %v86 = vshrl.u32 %v85, 7
  %v87 = vsub.s32 0, %v86
  %v88 = vrot.slane %v84, %v87
  %v89 = vmul.f32 %v22, %v88
  %v90 = vlaneseq
  %v91 = vshrl.u32 %v90, 7
  %v92 = vsub.s32 1, %v91
  %v93 = vrot.slane %v84, %v92
  %v94 = vmul.f32 %v34, %v93
  %v95 = vadd.f32 %v89, %v94
  %v96 = vlaneseq
  %v97 = vshrl.u32 %v96, 7
  %v98 = vsub.s32 2, %v97
  %v99 = vrot.slane %v84, %v98
  %v100 = vmul.f32 %v47, %v99
  %v101 = vadd.f32 %v95, %v100
  %v102 = vlaneseq
  %v103 = vshrl.u32 %v102, 7
  %v104 = vsub.s32 3, %v103
  %v105 = vrot.slane %v84, %v104
  %v106 = vmul.f32 %v60, %v105
  %v107 = vadd.f32 %v101, %v106
  %v108 = vadd.f32 %v107, %v71
  %v109 = vmax.f32 %v108, 0.0
  %v110 = vsel %vm75, %v109, 0.0
  %111 = vadd.xlane.f32.xlu0 %v110
  %v112 = vpop.xlane.xlu0 %111
  %v113 = vmul.f32 %v109, %v109
  %v114 = vsel %vm75, %v113, 0.0
  %115 = vadd.xlane.f32.xlu0 %v114
  %v116 = vpop.xlane.xlu0 %115
  %v117 = vadd.f32 %v78, %v112
  %v118 = vadd.f32 %v82, %v116
  %vm119 = vcmask 7168
  %120 = vst.msk [vmem:[%s3] sm:$0xff] %vm119, %v117
  %121 = vst.msk [vmem:[%s4] sm:$0xff] %vm119, %v118
  // Predicated region
  $region14: #{tpu_custom_call.1} parent=0 // pred_check
    _
  $region15: #{tpu_custom_call.1} parent=0 // pred_check_branch
    %123 = sbr.rel (0) target = $region17
  $region16: #{tpu_custom_call.1} parent=0 // pred_region
    _
  $region17: #{tpu_custom_call.1} parent=0 // pred_fallthru
    _
  // Predicated region
  $region18: #{tpu_custom_call.1} parent=0 // pred_check
    _
  $region19: #{tpu_custom_call.1} parent=0 // pred_check_branch
    %125 = sbr.rel (0) target = $region21
  $region20: #{tpu_custom_call.1} parent=0 // pred_region
    _
  $region21: #{tpu_custom_call.1} parent=0 // pred_fallthru
    _
  // Predicated region
  $region22: #{tpu_custom_call.1} parent=0 // pred_check
    _
  $region23: #{tpu_custom_call.1} parent=0 // pred_check_branch
    %127 = sbr.rel (0) target = $region25
  $region24: #{tpu_custom_call.1} parent=0 // pred_region
    _
  $region25: #{tpu_custom_call.1} parent=0 // pred_fallthru
    _
  // Predicated region
  $region26: #{tpu_custom_call.1} parent=0 // pred_check
    _
  $region27: #{tpu_custom_call.1} parent=0 // pred_check_branch
    %129 = sbr.rel (0) target = $region29
  $region28: #{tpu_custom_call.1} parent=0 // pred_region
    _
  $region29: #{tpu_custom_call.1} parent=0 // pred_fallthru
    _

</llo_original>
